<compile_context>
chip_gen: v5e
topology: v5e:2x2
jax: 0.10.0
libtpu: 0.0.40
codegen_flags: <defaults>
</compile_context>

<pallas_src>
import functools

import jax
import jax.numpy as jnp
from jax.experimental import pallas as pl
from jax.experimental.pallas import tpu as pltpu


def _round_up(x, m):
    return ((x + m - 1) // m) * m


def _residual_linear_kernel(*refs, h, activation, has_bias, num_col_tiles, tn):
    """One (col-tile, row-tile) block of: out = x + h * act(x @ W.T + b)."""
    idx = 0
    x_ref = refs[idx]; idx += 1                 # (TM, WP)  full feature rows
    wt_ref = refs[idx]; idx += 1                # (WP, TN)  W.T column block
    if has_bias:
        b_ref = refs[idx]; idx += 1             # (1, TN)
    o_ref = refs[idx]                           # (TM, TN)

    x = x_ref[...]                              # original dtype (residual source)
    w = wt_ref[...]
    # Wrapper guarantees the weight dtype is never wider than x's dtype, so the
    # only cast needed is x -> narrower weight dtype (bf16 MXU path).
    lhs = x if x.dtype == w.dtype else x.astype(w.dtype)
    y = jnp.dot(lhs, w, preferred_element_type=jnp.float32)          # MXU, f32 acc
    if has_bias:
        y = y + b_ref[...].astype(jnp.float32)

    if activation is None:
        pass
    elif activation == "tanh":
        y = jnp.tanh(y)
    elif activation == "relu":
        y = jnp.maximum(y, 0.0)
    elif activation == "gelu":
        y = jax.nn.gelu(y)
    elif activation == "sigmoid":
        y = jax.nn.sigmoid(y)
    elif callable(activation):
        y = activation(y)
    else:
        raise ValueError(f"unsupported activation: {activation}")

    # Residual columns: slice the already-resident row tile (no extra HBM read).
    if num_col_tiles == 1:
        x_res = x
    else:
        j = pl.program_id(0)
        x_res = x[:, 0:tn]                       # static 128-aligned lane slices
        for k in range(1, num_col_tiles):
            x_res = jnp.where(j == k, x[:, k * tn:(k + 1) * tn], x_res)

    o_ref[...] = (x_res.astype(jnp.float32) + h * y).astype(o_ref.dtype)


def residual_layer(x, weight, bias=None, h=1.0, activation=None, *,
                   block_rows=None, max_col_block=None,
                   weight_dtype=jnp.bfloat16, interpret=False):
    """JAX wrapper reproducing ResidualLayer.forward.

    x:      (..., width)
    weight: (width, width)  -- PyTorch nn.Linear convention (out, in)
    bias:   (width,) or None
    weight_dtype: dtype of the resident MXU weight (default bf16 -> full-rate
                  MXU, halved weight DMA/VMEM; expected ~1e-2 abs error).
                  Pass jnp.float32 for full precision.  The matmul operand
                  dtype is never wider than x's dtype.
    """
    width = weight.shape[0]
    assert weight.shape == (width, width)
    assert x.shape[-1] == width

    orig_shape = x.shape
    x2 = x.reshape(-1, width)
    n = x2.shape[0]

    # --- MXU operand dtype: narrower of (weight_dtype, x dtype) --------------
    x_dt = jnp.dtype(x.dtype)
    w_dt = jnp.dtype(weight_dtype) if weight_dtype is not None else jnp.dtype(weight.dtype)
    if jnp.issubdtype(x_dt, jnp.floating) and x_dt.itemsize < w_dt.itemsize:
        w_dt = x_dt                               # never upcast activations
    wt = weight.T.astype(w_dt)                    # (in, out) so the kernel does x @ W.T

    # --- lane-dense feature layout: pad width to a multiple of 128 ----------
    # TODO(synk): for ragged widths, keep the padded layout across layers (or
    # mask only the last lane tile in-kernel) to avoid these extra HBM passes.
    wp = _round_up(width, 128)
    if wp != width:
        x2 = jnp.pad(x2, ((0, 0), (0, wp - width)))
        wt = jnp.pad(wt, ((0, wp - width), (0, wp - width)))
    has_bias = bias is not None
    if has_bias:
        b2 = bias.astype(jnp.float32).reshape(1, width)
        if wp != width:
            b2 = jnp.pad(b2, ((0, 0), (0, wp - width)))

    xbytes = x2.dtype.itemsize
    obytes = xbytes
    wbytes = wt.dtype.itemsize

    # --- per-generation VMEM budget ------------------------------------------
    try:
        vmem_cap = int(pltpu.get_tpu_info().vmem_capacity_bytes)
    except Exception:
        vmem_cap = 64 << 20                       # conservative (v7x per-TC)
    budget = (vmem_cap * 3) // 4                  # ~96 MiB v5e/v6e, ~48 MiB v7x

    # --- column tile: exact divisor of wp, weight block resident in VMEM -----
    weight_budget = budget // 2
    m = wp // 128
    cap = wp if max_col_block is None else max(128, _round_up(min(max_col_block, wp), 128))

    def fits(tn_):
        return tn_ <= cap and wp * tn_ * wbytes <= weight_budget

    tn = None
    if wp >= 2048 and wp % 256 == 0:              # fill the 256x256 MXU (v6e/v7x)
        for nct in range(1, m + 1):
            if m % nct == 0 and (wp // nct) % 256 == 0 and fits(wp // nct):
                tn = wp // nct
                break
    if tn is None:
        for nct in range(1, m + 1):
            if m % nct == 0 and fits(wp // nct):
                tn = wp // nct
                break
    if tn is None:
        tn = 128                                  # last resort (absurdly large wp)
    num_col_tiles = wp // tn

    # --- row tile: move ~4 MiB of HBM traffic per grid step ------------------
    bytes_per_row = wp * xbytes + tn * obytes
    if block_rows is None:
        tm = max(512, _round_up((4 << 20) // max(bytes_per_row, 1), 8))
        tm = min(tm, 4096)
    else:
        tm = _round_up(block_rows, 8)
    tm = min(tm, _round_up(n, 8))
    # >= 2 row tiles so the "parallel" row axis can shard across v7x's 2 TCs.
    if n >= 2048 and pl.cdiv(n, tm) < 2:
        tm = _round_up(pl.cdiv(n, 2), 8)

    def vmem_need(tm_):
        return (wp * tn * wbytes                  # W.T block      (Buffered(1))
                + 2 * tm_ * wp * xbytes           # x row tile     (double-buffered)
                + 2 * tm_ * tn * obytes           # out tile       (double-buffered)
                + _round_up(tn, 128) * 4)         # bias           (Buffered(1))

    while tm > 8 and vmem_need(tm) > budget:
        tm = max(8, _round_up(tm // 2, 8))

    num_row_tiles = pl.cdiv(n, tm)
    # Prefer an even row-tile count so both v7x TensorCores get equal work.
    if num_row_tiles >= 3 and num_row_tiles % 2 == 1:
        tm2 = _round_up(pl.cdiv(n, num_row_tiles + 1), 8)
        if tm2 >= 8 and vmem_need(tm2) <= budget:
            tm = tm2
            num_row_tiles = pl.cdiv(n, tm)

    vmem_limit = int(min(max(budget, vmem_need(tm) + (2 << 20)), vmem_cap - (1 << 20)))

    grid = (num_col_tiles, num_row_tiles)         # cols outer -> W.T stays resident

    kernel = functools.partial(
        _residual_linear_kernel, h=float(h), activation=activation,
        has_bias=has_bias, num_col_tiles=num_col_tiles, tn=tn)

    in_specs = [pl.BlockSpec((tm, wp), lambda j, i: (i, 0))]          # x rows (full feat)
    args = [x2]
    in_specs.append(pl.BlockSpec((wp, tn), lambda j, i: (0, j),
                                 pipeline_mode=pl.Buffered(1)))       # resident W.T block
    args.append(wt)
    if has_bias:
        in_specs.append(pl.BlockSpec((1, tn), lambda j, i: (0, j),
                                     pipeline_mode=pl.Buffered(1)))
        args.append(b2)

    out = pl.pallas_call(
        kernel,
        out_shape=jax.ShapeDtypeStruct((n, wp), x.dtype),
        grid_spec=pltpu.PrefetchScalarGridSpec(
            num_scalar_prefetch=0,
            grid=grid,
            in_specs=in_specs,
            out_specs=pl.BlockSpec((tm, tn), lambda j, i: (i, j)),
        ),
        compiler_params=pltpu.CompilerParams(
            dimension_semantics=("arbitrary", "parallel"),   # shard ROWS on v7x megacore
            vmem_limit_bytes=vmem_limit),
        interpret=interpret,
    )(*args)

    if wp != width:
        out = out[:, :width]
    return out.reshape(orig_shape)


if __name__ == "__main__":
    key = jax.random.PRNGKey(0)
    k1, k2, k3, k4, kp = jax.random.split(key, 5)

    def linear_init(k, width):
        bound = 1.0 / (width ** 0.5)
        kw, kb = jax.random.split(k)
        w = jax.random.uniform(kw, (width, width), jnp.float32, -bound, bound)
        b = jax.random.uniform(kb, (width,), jnp.float32, -bound, bound)
        return w, b

    def ref_forward(x, w, b, h, activation):
        y = jnp.einsum("...i,oi->...o", x, w)
        if b is not None:
            y = y + b
        if activation == "tanh":
            y = jnp.tanh(y)
        elif activation == "relu":
            y = jnp.maximum(y, 0.0)
        return x + h * y

    # case 1: default bf16 MXU path, width=128, batch=2, seq=8, bias, identity
    w, b = linear_init(kp, 128)
    x = jax.random.normal(k1, (2, 8, 128), jnp.float32)
    out = jax.block_until_ready(residual_layer(x, w, b, h=0.5))
    assert out.shape == x.shape
    assert jnp.allclose(out, ref_forward(x, w, b, 0.5, None), atol=3e-2, rtol=3e-2)

    # case 2: width=32 (feature-padded to 128), ragged row count, no bias, tanh,
    #         full-precision f32 weights
    w2 = jax.random.uniform(k2, (32, 32), jnp.float32, -0.2, 0.2)
    x2 = jax.random.normal(k3, (3, 5, 32), jnp.float32)
    out2 = jax.block_until_ready(
        residual_layer(x2, w2, None, h=1.0, activation="tanh", weight_dtype=jnp.float32))
    assert jnp.allclose(out2, ref_forward(x2, w2, None, 1.0, "tanh"), atol=1e-5, rtol=1e-5)

    # case 3: explicit f32 weight path (tight tolerance), width=128
    out3 = jax.block_until_ready(residual_layer(x, w, b, h=0.5, weight_dtype=jnp.float32))
    assert jnp.allclose(out3, ref_forward(x, w, b, 0.5, None), atol=1e-5, rtol=1e-5)

    # case 4: forced column-tiled weight path (width=256, 2 column tiles) with
    #         in-VMEM residual column selection, default bf16 weights
    w4, b4 = linear_init(k4, 256)
    x4 = jax.random.normal(k1, (4, 10, 256), jnp.float32)
    out4 = jax.block_until_ready(residual_layer(x4, w4, b4, h=0.3, max_col_block=128))
    assert jnp.allclose(out4, ref_forward(x4, w4, b4, 0.3, None), atol=3e-2, rtol=3e-2)

    print("KERNEL_OK")
</pallas_src>

<mosaic_0001>
module attributes {stable_mosaic.version = 11 : i64} {
  func.func @_residual_linear_kernel(%arg0: i32, %arg1: i32, %arg2: memref<16x128xf32, #tpu.memory_space<vmem>>, %arg3: memref<128x128xbf16, #tpu.memory_space<vmem>>, %arg4: memref<1x128xf32, #tpu.memory_space<vmem>>, %arg5: memref<16x128xf32, #tpu.memory_space<vmem>>) attributes {dimension_semantics = [#tpu.dimension_semantics<arbitrary>, #tpu.dimension_semantics<parallel>], iteration_bounds = array<i64: 1, 1>, scalar_prefetch = 0 : i64, scratch_operands = 0 : i64, tpu.core_type = #tpu.core_type<tc>, window_params = [{transform_indices = @transform_0, window_bounds = array<i64: 16, 128>}, {pipeline_mode = #tpu.pipeline_mode<synchronous>, transform_indices = @transform_1, window_bounds = array<i64: 128, 128>}, {pipeline_mode = #tpu.pipeline_mode<synchronous>, transform_indices = @transform_2, window_bounds = array<i64: 1, 128>}, {transform_indices = @transform_3, window_bounds = array<i64: 16, 128>}]} {
    %c0 = arith.constant 0 : index
    %c0_0 = arith.constant 0 : index
    %0 = vector.load %arg2[%c0, %c0_0] : memref<16x128xf32, #tpu.memory_space<vmem>>, vector<16x128xf32>
    %c0_1 = arith.constant 0 : index
    %c0_2 = arith.constant 0 : index
    %1 = vector.load %arg3[%c0_1, %c0_2] : memref<128x128xbf16, #tpu.memory_space<vmem>>, vector<128x128xbf16>
    %2 = arith.truncf %0 : vector<16x128xf32> to vector<16x128xbf16>
    %cst = arith.constant dense<0.000000e+00> : vector<16x128xf32>
    %3 = tpu.matmul %2, %1, %cst {dimension_numbers = #tpu.dot_dimension_numbers<[1], [0], [0], [1], [0, 0, 1, 1], [], []>} : vector<16x128xbf16>, vector<128x128xbf16>, vector<16x128xf32> -> vector<16x128xf32>
    %c0_3 = arith.constant 0 : index
    %c0_4 = arith.constant 0 : index
    %4 = vector.load %arg4[%c0_3, %c0_4] : memref<1x128xf32, #tpu.memory_space<vmem>>, vector<1x128xf32>
    %5 = vector.broadcast %4 : vector<1x128xf32> to vector<16x128xf32>
    %6 = arith.addf %3, %5 : vector<16x128xf32>
    %cst_5 = arith.constant 5.000000e-01 : f32
    %7 = vector.broadcast %cst_5 : f32 to vector<16x128xf32>
    %8 = arith.mulf %7, %6 : vector<16x128xf32>
    %9 = arith.addf %0, %8 : vector<16x128xf32>
    %c0_6 = arith.constant 0 : index
    %c0_7 = arith.constant 0 : index
    %10 = vector.load %arg5[%c0_6, %c0_7] : memref<16x128xf32, #tpu.memory_space<vmem>>, vector<16x128xf32>
    tpu.vector_store %arg5[%c0_6, %c0_7], %9 {strides = array<i32>} : memref<16x128xf32, #tpu.memory_space<vmem>>, vector<16x128xf32>,
    return
  }
  func.func @transform_0(%arg0: i32, %arg1: i32) -> (i32, i32) {
    %c0_i32 = arith.constant 0 : i32
    %c0_i32_0 = arith.constant 0 : i32
    return %arg1, %c0_i32 : i32, i32
  }
  func.func @transform_1(%arg0: i32, %arg1: i32) -> (i32, i32) {
    %c0_i32 = arith.constant 0 : i32
    %c0_i32_0 = arith.constant 0 : i32
    return %c0_i32, %arg0 : i32, i32
  }
  func.func @transform_2(%arg0: i32, %arg1: i32) -> (i32, i32) {
    %c0_i32 = arith.constant 0 : i32
    %c0_i32_0 = arith.constant 0 : i32
    return %c0_i32, %arg0 : i32, i32
  }
  func.func @transform_3(%arg0: i32, %arg1: i32) -> (i32, i32) {
    %c0_i32 = arith.constant 0 : i32
    return %arg1, %arg0 : i32, i32
  }
}

</mosaic_0001>

<llo_original>
// kernel: tpu_custom_call.1
$region0: #{tpu_custom_call.1}
  #allocation0 [shape = 'u32[]', space=smem, size = 0x4, offset = 0x4, fixed_abs, tag = 'smem constant byte address 0x4 - core index']
  #allocation1 [shape = 'u32[72,128]{1,0:T(1,128)}', space=vmem, size = 0x9000, scoped, tag = 'internal scratch']
  %s0 = inlined_call_operand.hbm [shape: f32[16,128], index: 0, kind: input, shape index: {}]
  %s1 = inlined_call_operand.hbm [shape: bf16[128,128], index: 1, kind: input, shape index: {}]
  %s2 = inlined_call_operand.vmem [shape: f32[1,128], index: 2, kind: input, shape index: {}]
  %s3 = inlined_call_operand.hbm [shape: f32[16,128], index: 3, kind: output, shape index: {}]
  %s4 = sld [smem:[#allocation0]]
  $region30: #{tpu_custom_call.1} parent=0
    _
  %s6 = ssub.s32 1, %s4
  %s7 = scalar_select 0, %s6, %s4
  $region1: #{tpu_custom_call.1} parent=0
    #allocation2 [shape = 'u8[8192]{0}', space=vmem, size = 0x2000, scoped, tag = 'input window, operand 0, single buffered']
    #allocation3 [shape = 's32[1]{0}', space=sflag, size = 0x4, scoped, tag = 'scoped memory for tpu_custom_call.1']
    #allocation4 [shape = 's32[1]{0}', space=sflag, size = 0x4, scoped, tag = 'scoped memory for tpu_custom_call.1']
    #allocation5 [shape = 'u8[32768]{0}', space=vmem, size = 0x8000, scoped, tag = 'input window, operand 1, single buffered']
    #allocation6 [shape = 's32[1]{0}', space=sflag, size = 0x4, scoped, tag = 'scoped memory for tpu_custom_call.1']
    #allocation7 [shape = 'u8[8192]{0}', space=vmem, size = 0x2000, scoped, tag = 'output window, operand 0, single buffered']
    %8 = vsyncpa [#allocation3], 0
    %9 = vsyncpa [#allocation6], 0
    %10 = vsyncpa [#allocation4], 0
    // Predicated region
    $region2: #{tpu_custom_call.1} parent=1 // pred_check
      _
    $region3: #{tpu_custom_call.1} parent=1 // pred_check_branch
      %12 = sbr.rel (0) target = $region5
    $region4: #{tpu_custom_call.1} parent=1 // pred_region
      %14 = vsyncadd [#allocation3], 0
      %s15 = sshll.u32 %s0, 4
      %s16 = int_to_ptr.hbm [resolvable:$true] %s15
      %s17 = sshll.u32 [#allocation2], 4
      %s18 = int_to_ptr.vmem [resolvable:$true] %s17
      %23 = dma.hbm_to_vmem [thread:$0]  %s16, 256, %s18, [#allocation3], 128, 128, 8
    $region5: #{tpu_custom_call.1} parent=1 // pred_fallthru
      _
    // Predicated region
    $region6: #{tpu_custom_call.1} parent=1 // pred_check
      _
    $region7: #{tpu_custom_call.1} parent=1 // pred_check_branch
      %25 = sbr.rel (0) target = $region9
    $region8: #{tpu_custom_call.1} parent=1 // pred_region
      %27 = vsyncadd [#allocation6], 0
      %s28 = sshll.u32 %s1, 4
      %s29 = int_to_ptr.hbm [resolvable:$true] %s28
      %s30 = sshll.u32 [#allocation5], 4
      %s31 = int_to_ptr.vmem [resolvable:$true] %s30
      %36 = dma.hbm_to_vmem [thread:$0]  %s29, 1024, %s31, [#allocation6], 64, 64, 4
    $region9: #{tpu_custom_call.1} parent=1 // pred_fallthru
      _
    // Predicated region
    $region10: #{tpu_custom_call.1} parent=1 // pred_check
      _
    $region11: #{tpu_custom_call.1} parent=1 // pred_check_branch
      %38 = sbr.rel (0) target = $region13
    $region12: #{tpu_custom_call.1} parent=1 // pred_region
      _
    $region13: #{tpu_custom_call.1} parent=1 // pred_fallthru
      _
    // Predicated region
    $region14: #{tpu_custom_call.1} parent=1 // pred_check
      _
    $region15: #{tpu_custom_call.1} parent=1 // pred_check_branch
      %40 = sbr.rel (0) target = $region17
    $region16: #{tpu_custom_call.1} parent=1 // pred_region
      %42 = dma.done [#allocation3], 256
    $region17: #{tpu_custom_call.1} parent=1 // pred_fallthru
      _
    // Predicated region
    $region18: #{tpu_custom_call.1} parent=1 // pred_check
      _
    $region19: #{tpu_custom_call.1} parent=1 // pred_check_branch
      %44 = sbr.rel (0) target = $region21
    $region20: #{tpu_custom_call.1} parent=1 // pred_region
      %46 = dma.done [#allocation6], 1024
    $region21: #{tpu_custom_call.1} parent=1 // pred_fallthru
      _
    %v47 = vld [vmem:[#allocation2] sm:$0xff]
    %v48 = vld [vmem:[#allocation2 + $0x8] sm:$0xff]
    %v49 = vld [vmem:[#allocation5] sm:$0xf]
    %v50 = vld [vmem:[#allocation5 + $0x4] sm:$0xf]
    %v51 = vld [vmem:[#allocation5 + $0x8] sm:$0xf]
    %v52 = vld [vmem:[#allocation5 + $0xc] sm:$0xf]
    %v53 = vld [vmem:[#allocation5 + $0x10] sm:$0xf]
    %v54 = vld [vmem:[#allocation5 + $0x14] sm:$0xf]
    %v55 = vld [vmem:[#allocation5 + $0x18] sm:$0xf]
    %v56 = vld [vmem:[#allocation5 + $0x1c] sm:$0xf]
    %v57 = vld [vmem:[#allocation5 + $0x20] sm:$0xf]
    %v58 = vld [vmem:[#allocation5 + $0x24] sm:$0xf]
    %v59 = vld [vmem:[#allocation5 + $0x28] sm:$0xf]
    %v60 = vld [vmem:[#allocation5 + $0x2c] sm:$0xf]
    %v61 = vld [vmem:[#allocation5 + $0x30] sm:$0xf]
    %v62 = vld [vmem:[#allocation5 + $0x34] sm:$0xf]
    %v63 = vld [vmem:[#allocation5 + $0x38] sm:$0xf]
    %v64 = vld [vmem:[#allocation5 + $0x3c] sm:$0xf]
    %v65 = vpack.c.bf16 %v48, %v47
    %v66 = vld [vmem:[%s2] sm:$0x1]
    %v68 = vperm.slane %v66, 0
    %v86 = vunpack.c.l.b16 %v49
    %v87 = vunpack.c.l.b16 %v50
    %v88 = vunpack.c.l.b16 %v51
    %v89 = vunpack.c.l.b16 %v52
    %v90 = vunpack.c.l.b16 %v53
    %v91 = vunpack.c.l.b16 %v54
    %v92 = vunpack.c.l.b16 %v55
    %v93 = vunpack.c.l.b16 %v56
    %v94 = vunpack.c.l.b16 %v57
    %v95 = vunpack.c.l.b16 %v58
    %v96 = vunpack.c.l.b16 %v59
    %v97 = vunpack.c.l.b16 %v60
    %v98 = vunpack.c.l.b16 %v61
    %v99 = vunpack.c.l.b16 %v62
    %v100 = vunpack.c.l.b16 %v63
    %v101 = vunpack.c.l.b16 %v64
    %v102 = vpack.c.b16 %v87, %v86
    %v103 = vpack.c.b16 %v89, %v88
    %v104 = vpack.c.b16 %v91, %v90
    %v105 = vpack.c.b16 %v93, %v92
    %v106 = vpack.c.b16 %v95, %v94
    %v107 = vpack.c.b16 %v97, %v96
    %v108 = vpack.c.b16 %v99, %v98
    %v109 = vpack.c.b16 %v101, %v100
    %118 = vmatpush.bf16.msra.mxu0 %v109
    %119 = vmatpush.bf16.msra.mxu0 %v108
    %120 = vmatpush.bf16.msra.mxu0 %v107
    %121 = vmatpush.bf16.msra.mxu0 %v106
    %122 = vmatpush.bf16.msra.mxu0 %v105
    %123 = vmatpush.bf16.msra.mxu0 %v104
    %124 = vmatpush.bf16.msra.mxu0 %v103
    %125 = vmatpush.bf16.msra.mxu0 %v102
    %126 = vmatmul.bf16.gmra.mxu0 %v65
    %v127 = vpop.f32.mrf.mxu0
    %v128 = vadd.f32 %v68, %v127
    %v129 = vpop.f32.mrf.mxu0
    %v130 = vadd.f32 %v68, %v129
    %131 = vdwg.mxu0
    %v132 = vmul.f32 %v128, 0.5
    %v133 = vmul.f32 %v130, 0.5
    %v134 = vadd.f32 %v47, %v132
    %v135 = vadd.f32 %v48, %v133
    %136 = vst [vmem:[#allocation7] sm:$0xff] %v134
    %137 = vst [vmem:[#allocation7 + $0x8] sm:$0xff] %v135
    // Predicated region
    $region22: #{tpu_custom_call.1} parent=1 // pred_check
      _
    $region23: #{tpu_custom_call.1} parent=1 // pred_check_branch
      %139 = sbr.rel (0) target = $region25
    $region24: #{tpu_custom_call.1} parent=1 // pred_region
      %141 = vsyncadd [#allocation4], 0
      %s142 = sshll.u32 [#allocation7], 4
      %s143 = int_to_ptr.vmem [resolvable:$true] %s142
      %s144 = sshll.u32 %s3, 4
      %s145 = int_to_ptr.hbm [resolvable:$true] %s144
      %150 = dma.vmem_to_hbm [thread:$0]  %s143, 256, %s145, [#allocation4], 128, 128, 8
    $region25: #{tpu_custom_call.1} parent=1 // pred_fallthru
      _
    // Predicated region
    $region26: #{tpu_custom_call.1} parent=1 // pred_check
      _
    $region27: #{tpu_custom_call.1} parent=1 // pred_check_branch
      %152 = sbr.rel (0) target = $region29
    $region28: #{tpu_custom_call.1} parent=1 // pred_region
      %154 = dma.done [#allocation4], 256
    $region29: #{tpu_custom_call.1} parent=1 // pred_fallthru
      _
    %155 = vsyncpa [#allocation3], 1
    %156 = vsyncpa [#allocation6], 1
    %157 = vsyncpa [#allocation4], 1

</llo_original>
